<compile_context>
chip_gen: v7x
topology: tpu7x:2x2x1
jax: 0.10.0
libtpu: 0.0.40
codegen_flags: <defaults>
</compile_context>

<pallas_src>
import numpy as np
import jax
import jax.numpy as jnp
from jax.experimental import pallas as pl
from jax.experimental.pallas import tpu as pltpu

_BN_EPS = 1e-5       # torch BatchNorm1d default eps
_TM = 1024           # max td rows handled per grid step (sweep 512-2048)
_LANES = 128


def _round_up(x, m):
    return ((x + m - 1) // m) * m


# ----------------------------------------------------------------------------
# Pallas kernel: fused Linear(1,D) -> BN(eval, folded) -> ReLU -> Linear(D,D)
# ----------------------------------------------------------------------------
def _td_mlp_kernel(td_ref, w1_ref, b1_ref, w2_ref, b2_ref, o_ref):
    # td_ref: (TM, 1) f32   w1/b1: (1, DK) f32   w2: (DK, D) bf16
    # b2: (1, D) f32        o_ref: (TM, D) f32
    # Layer 1: Linear(1, D) is an outer product -> VPU broadcast, no MXU underfill.
    h = td_ref[...] * w1_ref[...] + b1_ref[...]               # (TM, DK)
    h = jnp.maximum(h, 0.0).astype(jnp.bfloat16)               # ReLU (BN folded); bf16 MXU operand
    # Layer 2: Linear(D, D) on the MXU, bf16 operands, f32 accumulation.
    y = jnp.dot(h, w2_ref[...], preferred_element_type=jnp.float32) + b2_ref[...]
    o_ref[...] = y.astype(o_ref.dtype)


# ----------------------------------------------------------------------------
# One-time parameter prep (hoisted out of the per-call path):
#   fold eval-mode BN, pad the hidden dim to 128 lanes, cast w2 to bf16.
# ----------------------------------------------------------------------------
def prepare_td_params(params, dim_out):
    (w1, b1), (w2, b2) = params          # w1: (1, D), b1: (D,), w2: (D, D), b2: (D,)
    bn_scale = np.float32(1.0 / np.sqrt(1.0 + _BN_EPS))
    dk = _round_up(dim_out, _LANES)      # hidden dim padded -> lane-dense layer-1 output

    w1p = jnp.zeros((1, dk), jnp.float32).at[:, :dim_out].set(
        w1.astype(jnp.float32).reshape(1, dim_out) * bn_scale)
    b1p = jnp.zeros((1, dk), jnp.float32).at[:, :dim_out].set(
        b1.astype(jnp.float32).reshape(1, dim_out) * bn_scale)
    # K (rows) padded to dk; N (cols) kept at dim_out so the output block's last
    # dim equals the full array dim (no lane padding / no post-slice).
    w2p = jnp.zeros((dk, dim_out), jnp.bfloat16).at[:dim_out, :].set(
        w2.astype(jnp.bfloat16))
    b2p = b2.astype(jnp.float32).reshape(1, dim_out)
    return (w1p, b1p, w2p, b2p)


# ----------------------------------------------------------------------------
# Wrapper: big row tiles, ragged last tile handled by Pallas, no pad/slice copies.
# ----------------------------------------------------------------------------
def td_encoder(td, prepared):
    """Mirrors TD_Encoder.forward: td (N, 1) -> (N, dim_out)."""
    if td.ndim == 1:
        td = td[:, None]
    n = td.shape[0]
    w1p, b1p, w2p, b2p = prepared
    dk = w1p.shape[1]
    dim_out = w2p.shape[1]

    # Row tile: as large as possible (amortize per-step overhead), but clamped so
    # the grid has >= 2 steps and the "parallel" axis can shard across v7x's 2 TCs.
    tm = min(_TM, _round_up(pl.cdiv(n, 2), 8))
    grid = pl.cdiv(n, tm)

    full = lambda i: (0, 0)
    out = pl.pallas_call(
        _td_mlp_kernel,
        # Output is exactly (n, dim_out): no row padding, no lane padding, no slice.
        # TODO(synk): emit bf16 output here if the downstream consumer accepts it
        # (halves the dominant HBM write stream).
        out_shape=jax.ShapeDtypeStruct((n, dim_out), jnp.float32),
        grid_spec=pltpu.PrefetchScalarGridSpec(
            num_scalar_prefetch=0,
            grid=(grid,),
            in_specs=[
                pl.BlockSpec((tm, 1), lambda i: (i, 0)),    # td rows
                pl.BlockSpec((1, dk), full),                # w1 (resident, BN folded)
                pl.BlockSpec((1, dk), full),                # b1 (resident, BN folded)
                pl.BlockSpec((dk, dim_out), full),          # w2 (resident, bf16)
                pl.BlockSpec((1, dim_out), full),           # b2 (resident)
            ],
            out_specs=pl.BlockSpec((tm, dim_out), lambda i: (i, 0)),
        ),
        compiler_params=pltpu.CompilerParams(
            dimension_semantics=("parallel",),
            # 32 MiB is ample here (output tile <= 4 MiB double-buffered, bf16 w2).
            # On v6e this can be raised further if _TM / dim_out are pushed up.
            vmem_limit_bytes=32 * 1024 * 1024),
    )(td.astype(jnp.float32), w1p, b1p, w2p, b2p)

    return out


# ----------------------------------------------------------------------------
# Deterministic parameter initialization (synthetic; shapes from __init__).
# ----------------------------------------------------------------------------
def init_td_params(key, dim_out):
    k1, k2, k3, k4 = jax.random.split(key, 4)
    w1 = jax.random.normal(k1, (1, dim_out), jnp.float32) * np.sqrt(2.0 / 1.0)
    b1 = jax.random.normal(k2, (dim_out,), jnp.float32) * 0.1
    w2 = jax.random.normal(k3, (dim_out, dim_out), jnp.float32) * np.sqrt(2.0 / dim_out)
    b2 = jax.random.normal(k4, (dim_out,), jnp.float32) * 0.1
    return ((w1, b1), (w2, b2))


if __name__ == "__main__":
    dim_out = 64
    n = 600                      # not a multiple of the row tile; exercises the ragged last tile

    key = jax.random.PRNGKey(0)
    k_td, k_p = jax.random.split(key)
    td = jax.random.normal(k_td, (n, 1), jnp.float32)
    params = init_td_params(k_p, dim_out)

    prepared = prepare_td_params(params, dim_out)   # hoisted one-time prep
    out = td_encoder(td, prepared)
    jax.block_until_ready(out)
    assert out.shape == (n, dim_out)

    # Plain-JAX reference mirroring the kernel's math:
    # Linear(1,D) -> eval-mode BN (default running stats, folded) -> ReLU
    # -> Linear(D,D) with bf16 operands and f32 accumulation.
    (w1, b1), (w2, b2) = params
    s = np.float32(1.0 / np.sqrt(1.0 + _BN_EPS))
    h_ref = jnp.maximum(td * (w1 * s) + (b1 * s), 0.0)
    ref = jnp.dot(h_ref.astype(jnp.bfloat16), w2.astype(jnp.bfloat16),
                  preferred_element_type=jnp.float32) + b2
    assert jnp.allclose(out, ref, atol=2e-2, rtol=2e-2), \
        f"max abs err vs bf16-matched ref: {float(jnp.max(jnp.abs(out - ref)))}"

    # Sanity check against the full-f32 reference (bf16 operand rounding only).
    ref_f32 = jnp.dot(h_ref, w2, precision=jax.lax.Precision.HIGHEST) + b2
    assert jnp.allclose(out, ref_f32, atol=1e-1, rtol=1e-1), \
        f"max abs err vs f32 ref: {float(jnp.max(jnp.abs(out - ref_f32)))}"

    print("KERNEL_OK")
</pallas_src>

<mosaic_0001>
module attributes {stable_mosaic.version = 11 : i64} {
  func.func @_td_mlp_kernel(%arg0: i32, %arg1: memref<304x1xf32, #tpu.memory_space<vmem>>, %arg2: memref<1x128xf32, #tpu.memory_space<vmem>>, %arg3: memref<1x128xf32, #tpu.memory_space<vmem>>, %arg4: memref<128x64xbf16, #tpu.memory_space<vmem>>, %arg5: memref<1x64xf32, #tpu.memory_space<vmem>>, %arg6: memref<304x64xf32, #tpu.memory_space<vmem>>) attributes {dimension_semantics = [#tpu.dimension_semantics<parallel>], iteration_bounds = array<i64: 2>, scalar_prefetch = 0 : i64, scratch_operands = 0 : i64, tpu.core_type = #tpu.core_type<tc>, window_params = [{transform_indices = @transform_0, window_bounds = array<i64: 304, 1>}, {pipeline_mode = #tpu.pipeline_mode<synchronous>, transform_indices = @transform_1, window_bounds = array<i64: 1, 128>}, {pipeline_mode = #tpu.pipeline_mode<synchronous>, transform_indices = @transform_2, window_bounds = array<i64: 1, 128>}, {pipeline_mode = #tpu.pipeline_mode<synchronous>, transform_indices = @transform_3, window_bounds = array<i64: 128, 64>}, {pipeline_mode = #tpu.pipeline_mode<synchronous>, transform_indices = @transform_4, window_bounds = array<i64: 1, 64>}, {transform_indices = @transform_5, window_bounds = array<i64: 304, 64>}]} {
    %c0 = arith.constant 0 : index
    %c0_0 = arith.constant 0 : index
    %0 = vector.load %arg1[%c0, %c0_0] : memref<304x1xf32, #tpu.memory_space<vmem>>, vector<304x1xf32>
    %c0_1 = arith.constant 0 : index
    %c0_2 = arith.constant 0 : index
    %1 = vector.load %arg2[%c0_1, %c0_2] : memref<1x128xf32, #tpu.memory_space<vmem>>, vector<1x128xf32>
    %2 = vector.broadcast %0 : vector<304x1xf32> to vector<304x128xf32>
    %3 = vector.broadcast %1 : vector<1x128xf32> to vector<304x128xf32>
    %4 = arith.mulf %2, %3 : vector<304x128xf32>
    %c0_3 = arith.constant 0 : index
    %c0_4 = arith.constant 0 : index
    %5 = vector.load %arg3[%c0_3, %c0_4] : memref<1x128xf32, #tpu.memory_space<vmem>>, vector<1x128xf32>
    %6 = vector.broadcast %5 : vector<1x128xf32> to vector<304x128xf32>
    %7 = arith.addf %4, %6 : vector<304x128xf32>
    %cst = arith.constant 0.000000e+00 : f32
    %8 = vector.broadcast %cst : f32 to vector<304x128xf32>
    %9 = arith.maximumf %7, %8 : vector<304x128xf32>
    %10 = arith.truncf %9 : vector<304x128xf32> to vector<304x128xbf16>
    %c0_5 = arith.constant 0 : index
    %c0_6 = arith.constant 0 : index
    %11 = vector.load %arg4[%c0_5, %c0_6] : memref<128x64xbf16, #tpu.memory_space<vmem>>, vector<128x64xbf16>
    %cst_7 = arith.constant dense<0.000000e+00> : vector<304x64xf32>
    %12 = tpu.matmul %10, %11, %cst_7 {dimension_numbers = #tpu.dot_dimension_numbers<[1], [0], [0], [1], [0, 0, 1, 1], [], []>} : vector<304x128xbf16>, vector<128x64xbf16>, vector<304x64xf32> -> vector<304x64xf32>
    %c0_8 = arith.constant 0 : index
    %c0_9 = arith.constant 0 : index
    %13 = vector.load %arg5[%c0_8, %c0_9] : memref<1x64xf32, #tpu.memory_space<vmem>>, vector<1x64xf32>
    %14 = vector.broadcast %13 : vector<1x64xf32> to vector<304x64xf32>
    %15 = arith.addf %12, %14 : vector<304x64xf32>
    %c0_10 = arith.constant 0 : index
    %c0_11 = arith.constant 0 : index
    %16 = vector.load %arg6[%c0_10, %c0_11] : memref<304x64xf32, #tpu.memory_space<vmem>>, vector<304x64xf32>
    tpu.vector_store %arg6[%c0_10, %c0_11], %15 {strides = array<i32>} : memref<304x64xf32, #tpu.memory_space<vmem>>, vector<304x64xf32>,
    return
  }
  func.func @transform_0(%arg0: i32) -> (i32, i32) {
    %c0_i32 = arith.constant 0 : i32
    %c0_i32_0 = arith.constant 0 : i32
    return %arg0, %c0_i32 : i32, i32
  }
  func.func @transform_1(%arg0: i32) -> (i32, i32) {
    %c0_i32 = arith.constant 0 : i32
    %c0_i32_0 = arith.constant 0 : i32
    %c0_i32_1 = arith.constant 0 : i32
    return %c0_i32, %c0_i32_0 : i32, i32
  }
  func.func @transform_2(%arg0: i32) -> (i32, i32) {
    %c0_i32 = arith.constant 0 : i32
    %c0_i32_0 = arith.constant 0 : i32
    %c0_i32_1 = arith.constant 0 : i32
    return %c0_i32, %c0_i32_0 : i32, i32
  }
  func.func @transform_3(%arg0: i32) -> (i32, i32) {
    %c0_i32 = arith.constant 0 : i32
    %c0_i32_0 = arith.constant 0 : i32
    %c0_i32_1 = arith.constant 0 : i32
    return %c0_i32, %c0_i32_0 : i32, i32
  }
  func.func @transform_4(%arg0: i32) -> (i32, i32) {
    %c0_i32 = arith.constant 0 : i32
    %c0_i32_0 = arith.constant 0 : i32
    %c0_i32_1 = arith.constant 0 : i32
    return %c0_i32, %c0_i32_0 : i32, i32
  }
  func.func @transform_5(%arg0: i32) -> (i32, i32) {
    %c0_i32 = arith.constant 0 : i32
    %c0_i32_0 = arith.constant 0 : i32
    return %arg0, %c0_i32 : i32, i32
  }
}

</mosaic_0001>

<llo_original>
// kernel: tpu_custom_call.1
$region0: #{tpu_custom_call.1}
  #allocation0 [shape = 'u32[]', space=smem, size = 0x4, offset = 0x4, fixed_abs, tag = 'smem constant byte address 0x4 - core index']
  #allocation1 [shape = 'u32[144,128]{1,0:T(1,128)}', space=vmem, size = 0x12000, scoped, tag = 'internal scratch']
  %s0 = inlined_call_operand.vmem [shape: f32[600,1], index: 0, kind: input, shape index: {}]
  %s1 = inlined_call_operand.vmem [shape: f32[1,128], index: 1, kind: input, shape index: {}]
  %s2 = inlined_call_operand.vmem [shape: f32[1,128], index: 2, kind: input, shape index: {}]
  %s3 = inlined_call_operand.vmem [shape: bf16[128,64], index: 3, kind: input, shape index: {}]
  %s4 = inlined_call_operand.vmem [shape: f32[1,64], index: 4, kind: input, shape index: {}]
  %s5 = inlined_call_operand.vmem [shape: f32[600,64], index: 5, kind: output, shape index: {}]
  %s6 = sld [smem:[#allocation0]]
  $region101: #{tpu_custom_call.1} parent=0
    _
  %s8 = ssub.s32 1, %s6
  %s9 = scalar_select 0, %s8, %s6
  $region1: #{tpu_custom_call.1} parent=0
    #allocation2 [shape = 'u8[311296]{0}', space=vmem, size = 0x4c000, scoped, tag = 'output window, operand 0']
    loop: start=0, step=1, limit=4
    $region2: #{tpu_custom_call.1} parent=1 // loop_pre_header
      _
    $region3: #{tpu_custom_call.1} parent=1 // loop_header
      %s11 = sphi 0, %s15
      %p12 = scmp.ge.s32.totalorder %s11, 4
      %s21 = sphi 0, %s23
      %s24 = sphi 0, %s21
      %s25 = sphi 0, %s24
      %s41 = sphi 0, %s25
      %s45 = sphi 0, %s45
      %s47 = sphi 0, %s45
      %s48 = sphi 0, %s47
      %s62 = sphi 0, %s48
      %s66 = sphi 0, %s66
      %s68 = sphi 0, %s66
      %s69 = sphi 0, %s68
      %s83 = sphi 0, %s69
      %s87 = sphi 0, %s87
      %s89 = sphi 0, %s87
      %s90 = sphi 0, %s89
      %s104 = sphi 0, %s90
      %s108 = sphi 0, %s108
      %s110 = sphi 0, %s108
      %s111 = sphi 0, %s110
      %s125 = sphi 0, %s111
      %s131 = sphi 0, %s133
      %s134 = sphi 0, %s131
      %s135 = sphi 0, %s134
      %s151 = sphi 0, %s135
    $region4: #{tpu_custom_call.1} parent=1 // loop_header_branch
      %14 = sbr.rel (%p12) target = $region8
    $region5: #{tpu_custom_call.1} parent=1 // loop_body
      %s16 = ssub.s32 %s11, 1
      %s17 = ssub.s32 %s11, 2
      %s18 = sadd.s32 %s11, 1
      %s19 = ssub.s32 %s11, %s18
      %p20 = scmp.eq.s32.totalorder %s19, 0
      %s22 = sadd.s32 %s21, 1
      %s23 = scalar_select %p20, %s21, %s22
      %p26 = pneg %p20
      %p27 = scmp.eq.s32.totalorder %s11, 1
      %p28 = por %p26, %p27
      %p29 = scmp.ne.s32.totalorder %s21, %s24
      %p30 = scmp.eq.s32.totalorder %s11, 0
      %p31 = por %p29, %p30
      %p32 = scmp.ne.s32.totalorder %s21, %s24
      %p33 = scmp.eq.s32.totalorder %s16, 1
      %p34 = por %p32, %p33
      %p35 = scmp.ne.s32.totalorder %s24, %s25
      %p36 = scmp.eq.s32.totalorder %s16, 0
      %p37 = por %p35, %p36
      %p38 = scmp.ne.s32.totalorder %s24, %s25
      %p39 = scmp.eq.s32.totalorder %s17, 1
      %p40 = por %p38, %p39
      %p42 = scmp.ne.s32.totalorder %s25, %s41
      %p43 = scmp.eq.s32.totalorder %s17, 0
      %p44 = por %p42, %p43
      %s46 = sadd.s32 %s45, 1
      %p49 = scmp.eq.s32.totalorder %s11, 1
      %p50 = scmp.ne.s32.totalorder %s45, %s47
      %p51 = scmp.eq.s32.totalorder %s11, 0
      %p52 = por %p50, %p51
      %p53 = scmp.ne.s32.totalorder %s45, %s47
      %p54 = scmp.eq.s32.totalorder %s16, 1
      %p55 = por %p53, %p54
      %p56 = scmp.ne.s32.totalorder %s47, %s48
      %p57 = scmp.eq.s32.totalorder %s16, 0
      %p58 = por %p56, %p57
      %p59 = scmp.ne.s32.totalorder %s47, %s48
      %p60 = scmp.eq.s32.totalorder %s17, 1
      %p61 = por %p59, %p60
      %p63 = scmp.ne.s32.totalorder %s48, %s62
      %p64 = scmp.eq.s32.totalorder %s17, 0
      %p65 = por %p63, %p64
      %s67 = sadd.s32 %s66, 1
      %p70 = scmp.eq.s32.totalorder %s11, 1
      %p71 = scmp.ne.s32.totalorder %s66, %s68
      %p72 = scmp.eq.s32.totalorder %s11, 0
      %p73 = por %p71, %p72
      %p74 = scmp.ne.s32.totalorder %s66, %s68
      %p75 = scmp.eq.s32.totalorder %s16, 1
      %p76 = por %p74, %p75
      %p77 = scmp.ne.s32.totalorder %s68, %s69
      %p78 = scmp.eq.s32.totalorder %s16, 0
      %p79 = por %p77, %p78
      %p80 = scmp.ne.s32.totalorder %s68, %s69
      %p81 = scmp.eq.s32.totalorder %s17, 1
      %p82 = por %p80, %p81
      %p84 = scmp.ne.s32.totalorder %s69, %s83
      %p85 = scmp.eq.s32.totalorder %s17, 0
      %p86 = por %p84, %p85
      %s88 = sadd.s32 %s87, 1
      %p91 = scmp.eq.s32.totalorder %s11, 1
      %p92 = scmp.ne.s32.totalorder %s87, %s89
      %p93 = scmp.eq.s32.totalorder %s11, 0
      %p94 = por %p92, %p93
      %p95 = scmp.ne.s32.totalorder %s87, %s89
      %p96 = scmp.eq.s32.totalorder %s16, 1
      %p97 = por %p95, %p96
      %p98 = scmp.ne.s32.totalorder %s89, %s90
      %p99 = scmp.eq.s32.totalorder %s16, 0
      %p100 = por %p98, %p99
      %p101 = scmp.ne.s32.totalorder %s89, %s90
      %p102 = scmp.eq.s32.totalorder %s17, 1
      %p103 = por %p101, %p102
      %p105 = scmp.ne.s32.totalorder %s90, %s104
      %p106 = scmp.eq.s32.totalorder %s17, 0
      %p107 = por %p105, %p106
      %s109 = sadd.s32 %s108, 1
      %p112 = scmp.eq.s32.totalorder %s11, 1
      %p113 = scmp.ne.s32.totalorder %s108, %s110
      %p114 = scmp.eq.s32.totalorder %s11, 0
      %p115 = por %p113, %p114
      %p116 = scmp.ne.s32.totalorder %s108, %s110
      %p117 = scmp.eq.s32.totalorder %s16, 1
      %p118 = por %p116, %p117
      %p119 = scmp.ne.s32.totalorder %s110, %s111
      %p120 = scmp.eq.s32.totalorder %s16, 0
      %p121 = por %p119, %p120
      %p122 = scmp.ne.s32.totalorder %s110, %s111
      %p123 = scmp.eq.s32.totalorder %s17, 1
      %p124 = por %p122, %p123
      %p126 = scmp.ne.s32.totalorder %s111, %s125
      %p127 = scmp.eq.s32.totalorder %s17, 0
      %p128 = por %p126, %p127
      %s129 = ssub.s32 %s11, %s18
      %p130 = scmp.eq.s32.totalorder %s129, 0
      %s132 = sadd.s32 %s131, 1
      %s133 = scalar_select %p130, %s131, %s132
      %p136 = pneg %p130
      %p137 = scmp.eq.s32.totalorder %s11, 1
      %p138 = por %p136, %p137
      %p139 = scmp.ne.s32.totalorder %s131, %s134
      %p140 = scmp.eq.s32.totalorder %s11, 0
      %p141 = por %p139, %p140
      %p142 = scmp.ne.s32.totalorder %s131, %s134
      %p143 = scmp.eq.s32.totalorder %s16, 1
      %p144 = por %p142, %p143
      %p145 = scmp.ne.s32.totalorder %s134, %s135
      %p146 = scmp.eq.s32.totalorder %s16, 0
      %p147 = por %p145, %p146
      %p148 = scmp.ne.s32.totalorder %s134, %s135
      %p149 = scmp.eq.s32.totalorder %s17, 1
      %p150 = por %p148, %p149
      %p152 = scmp.ne.s32.totalorder %s135, %s151
      %p153 = scmp.eq.s32.totalorder %s17, 0
      %p154 = por %p152, %p153
      %p155 = scmp.le.s32.totalorder 1, %s11
      %p156 = scmp.lt.s32.totalorder %s11, 3
      %p157 = pnand %p155, %p156
      %p158 = pneg %p157
      // Predicated region
      $region9: #{tpu_custom_call.1} parent=5 // pred_check
        _
      $region10: #{tpu_custom_call.1} parent=5 // pred_check_branch
        %160 = sbr.rel (%p157) target = $region12
      $region11: #{tpu_custom_call.1} parent=5 // pred_region
        %s161 = ssub.s32 %s11, 1
        // Predicated region
        $region13: #{tpu_custom_call.1} parent=11 // pred_check
          %p162 = pneg %p58
        $region14: #{tpu_custom_call.1} parent=11 // pred_check_branch
          %164 = sbr.rel (%p162) target = $region16
        $region15: #{tpu_custom_call.1} parent=11 // pred_region
          _
        $region16: #{tpu_custom_call.1} parent=11 // pred_fallthru
          _
        // Predicated region
        $region17: #{tpu_custom_call.1} parent=11 // pred_check
          %p165 = pneg %p79
        $region18: #{tpu_custom_call.1} parent=11 // pred_check_branch
          %167 = sbr.rel (%p165) target = $region20
        $region19: #{tpu_custom_call.1} parent=11 // pred_region
          _
        $region20: #{tpu_custom_call.1} parent=11 // pred_fallthru
          _
        // Predicated region
        $region21: #{tpu_custom_call.1} parent=11 // pred_check
          %p168 = pneg %p100
        $region22: #{tpu_custom_call.1} parent=11 // pred_check_branch
          %170 = sbr.rel (%p168) target = $region24
        $region23: #{tpu_custom_call.1} parent=11 // pred_region
          _
        $region24: #{tpu_custom_call.1} parent=11 // pred_fallthru
          _
        // Predicated region
        $region25: #{tpu_custom_call.1} parent=11 // pred_check
          %p171 = pneg %p121
        $region26: #{tpu_custom_call.1} parent=11 // pred_check_branch
          %173 = sbr.rel (%p171) target = $region28
        $region27: #{tpu_custom_call.1} parent=11 // pred_region
          _
        $region28: #{tpu_custom_call.1} parent=11 // pred_fallthru
          _
      $region12: #{tpu_custom_call.1} parent=5 // pred_fallthru
        _
      %p174 = scmp.lt.s32.totalorder %s11, 2
      // Predicated region
      $region29: #{tpu_custom_call.1} parent=5 // pred_check
        %p175 = pneg %p174
      $region30: #{tpu_custom_call.1} parent=5 // pred_check_branch
        %177 = sbr.rel (%p175) target = $region32
      $region31: #{tpu_custom_call.1} parent=5 // pred_region
        // Predicated region
        $region33: #{tpu_custom_call.1} parent=31 // pred_check
          %p178 = pneg %p31
        $region34: #{tpu_custom_call.1} parent=31 // pred_check_branch
          %180 = sbr.rel (%p178) target = $region36
        $region35: #{tpu_custom_call.1} parent=31 // pred_region
          %s181 = smul.u32 38, %s11
          %s182 = ssub.s32 75, %s181
          %p183 = scmp.lt.s32.totalorder %s182, 38
          %s184 = scalar_select %p183, %s182, 38
          %s185 = smul.u32 128, %s184
          %p186 = scmp.lt.s32.totalorder %s181, 74
          %s187 = scalar_select %p186, %s181, 74
          %s188 = smul.addr %s187, 8
          %s189 = scalar_lea.vmem %s0, %s188
          %s190 = smul.u32 38, %s11
          %s191 = ssub.s32 75, %s190
          %p192 = scmp.lt.s32.totalorder %s191, 38
          %s193 = scalar_select %p192, %s191, 38
          %s194 = smul.u32 128, %s193
        $region36: #{tpu_custom_call.1} parent=31 // pred_fallthru
          _
      $region32: #{tpu_custom_call.1} parent=5 // pred_fallthru
        _
      %p195 = scmp.le.s32.totalorder 1, %s11
      %p196 = scmp.lt.s32.totalorder %s11, 3
      %p197 = pnand %p195, %p196
      %p198 = pneg %p197
      // Predicated region
      $region37: #{tpu_custom_call.1} parent=5 // pred_check
        _
      $region38: #{tpu_custom_call.1} parent=5 // pred_check_branch
        %200 = sbr.rel (%p197) target = $region40
      $region39: #{tpu_custom_call.1} parent=5 // pred_region
        %s201 = ssub.s32 %s11, 1
        %s202 = smul.u32 38, %s16
        %s203 = ssub.s32 75, %s202
        %p204 = scmp.lt.s32.totalorder %s203, 38
        %s205 = scalar_select %p204, %s203, 38
        %s206 = smul.u32 128, %s205
        %p207 = scmp.lt.s32.totalorder %s202, 74
        %s208 = scalar_select %p207, %s202, 74
        %s209 = smul.addr %s208, 8
        %s210 = scalar_lea.vmem %s0, %s209
        %p211 = pneg %p37
        %p212 = pneg %p34
        %p213 = pneg %p58
        %p214 = pneg %p55
        %p215 = pneg %p79
        %p216 = pneg %p76
        %p217 = pneg %p100
        %p218 = pneg %p97
        %p219 = pneg %p121
        %p220 = pneg %p118
        %p221 = pneg %p147
        %p222 = pneg %p144
        %s223 = sand.u32 %s134, 1
        %s224 = sand.u32 %s134, 1
        %s225 = smul.addr %s224, 304
        %s226 = scalar_lea.vmem [#allocation2], %s225
        %s227 = smul.u32 38, %s16
        %s228 = ssub.s32 75, %s227
        %p229 = scmp.lt.s32.totalorder %s228, 38
        %s230 = scalar_select %p229, %s228, 38
        %s231 = smul.u32 128, %s230
        %p232 = scmp.lt.s32.totalorder %s227, 74
        %s233 = scalar_select %p232, %s227, 74
        %s234 = smul.addr %s233, 8
        %s235 = scalar_lea.vmem %s0, %s234
        %s236 = smul.u32 38, %s16
        %s237 = ssub.s32 75, %s236
        %p238 = scmp.lt.s32.totalorder %s237, 38
        %s239 = scalar_select %p238, %s237, 38
        %s240 = smul.u32 128, %s239
        %s241 = smul.u32 38, %s16
        %s242 = ssub.s32 75, %s241
        %p243 = scmp.lt.s32.totalorder %s242, 38
        %s244 = scalar_select %p243, %s242, 38
        %s245 = smul.u32 128, %s244
        %v247 = vld [vmem:[%s235] sm:$0xff]
        %v248 = vld [vmem:[%s235 + $0x8] sm:$0xff]
        %v249 = vld [vmem:[%s235 + $0x10] sm:$0xff]
        %v250 = vld [vmem:[%s235 + $0x18] sm:$0xff]
        %v251 = vld [vmem:[%s235 + $0x20] sm:$0xff]
        %v252 = vld [vmem:[%s235 + $0x28] sm:$0xff]
        %v253 = vld [vmem:[%s235 + $0x30] sm:$0xff]
        %v254 = vld [vmem:[%s235 + $0x38] sm:$0xff]
        %v255 = vld [vmem:[%s235 + $0x40] sm:$0xff]
        %v256 = vld [vmem:[%s235 + $0x48] sm:$0xff]
        %v257 = vld [vmem:[%s235 + $0x50] sm:$0xff]
        %v258 = vld [vmem:[%s235 + $0x58] sm:$0xff]
        %v259 = vld [vmem:[%s235 + $0x60] sm:$0xff]
        %v260 = vld [vmem:[%s235 + $0x68] sm:$0xff]
        %v261 = vld [vmem:[%s235 + $0x70] sm:$0xff]
        %v262 = vld [vmem:[%s235 + $0x78] sm:$0xff]
        %v263 = vld [vmem:[%s235 + $0x80] sm:$0xff]
        %v264 = vld [vmem:[%s235 + $0x88] sm:$0xff]
        %v265 = vld [vmem:[%s235 + $0x90] sm:$0xff]
        %v266 = vld [vmem:[%s235 + $0x98] sm:$0xff]
        %v267 = vld [vmem:[%s235 + $0xa0] sm:$0xff]
        %v268 = vld [vmem:[%s235 + $0xa8] sm:$0xff]
        %v269 = vld [vmem:[%s235 + $0xb0] sm:$0xff]
        %v270 = vld [vmem:[%s235 + $0xb8] sm:$0xff]
        %v271 = vld [vmem:[%s235 + $0xc0] sm:$0xff]
        %v272 = vld [vmem:[%s235 + $0xc8] sm:$0xff]
        %v273 = vld [vmem:[%s235 + $0xd0] sm:$0xff]
        %v274 = vld [vmem:[%s235 + $0xd8] sm:$0xff]
        %v275 = vld [vmem:[%s235 + $0xe0] sm:$0xff]
        %v276 = vld [vmem:[%s235 + $0xe8] sm:$0xff]
        %v277 = vld [vmem:[%s235 + $0xf0] sm:$0xff]
        %v278 = vld [vmem:[%s235 + $0xf8] sm:$0xff]
        %v279 = vld [vmem:[%s235 + $0x100] sm:$0xff]
        %v280 = vld [vmem:[%s235 + $0x108] sm:$0xff]
        %v281 = vld [vmem:[%s235 + $0x110] sm:$0xff]
        %v282 = vld [vmem:[%s235 + $0x118] sm:$0xff]
        %v283 = vld [vmem:[%s235 + $0x120] sm:$0xff]
        %v284 = vld [vmem:[%s235 + $0x128] sm:$0xff]
        %v285 = vld [vmem:[%s1] sm:$0x1]
        %287 = vset.pattern.permute.xlu0 0
        %288 = vperm.xlu0 %287, %v247
        %v289 = vpop.permute.xlu0 %288
        %292 = vset.pattern.permute.xlu0 0
        %293 = vperm.xlu0 %292, %v248
        %v294 = vpop.permute.xlu0 %293
        %297 = vset.pattern.permute.xlu0 0
        %298 = vperm.xlu0 %297, %v249
        %v299 = vpop.permute.xlu0 %298
        %302 = vset.pattern.permute.xlu0 0
        %303 = vperm.xlu0 %302, %v250
        %v304 = vpop.permute.xlu0 %303
        %307 = vset.pattern.permute.xlu0 0
        %308 = vperm.xlu0 %307, %v251
        %v309 = vpop.permute.xlu0 %308
        %312 = vset.pattern.permute.xlu0 0
        %313 = vperm.xlu0 %312, %v252
        %v314 = vpop.permute.xlu0 %313
        %317 = vset.pattern.permute.xlu0 0
        %318 = vperm.xlu0 %317, %v253
        %v319 = vpop.permute.xlu0 %318
        %322 = vset.pattern.permute.xlu0 0
        %323 = vperm.xlu0 %322, %v254
        %v324 = vpop.permute.xlu0 %323
        %327 = vset.pattern.permute.xlu0 0
        %328 = vperm.xlu0 %327, %v255
        %v329 = vpop.permute.xlu0 %328
        %332 = vset.pattern.permute.xlu0 0
        %333 = vperm.xlu0 %332, %v256
        %v334 = vpop.permute.xlu0 %333
        %337 = vset.pattern.permute.xlu0 0
        %338 = vperm.xlu0 %337, %v257
        %v339 = vpop.permute.xlu0 %338
        %342 = vset.pattern.permute.xlu0 0
        %343 = vperm.xlu0 %342, %v258
        %v344 = vpop.permute.xlu0 %343
        %347 = vset.pattern.permute.xlu0 0
        %348 = vperm.xlu0 %347, %v259
        %v349 = vpop.permute.xlu0 %348
        %352 = vset.pattern.permute.xlu0 0
        %353 = vperm.xlu0 %352, %v260
        %v354 = vpop.permute.xlu0 %353
        %357 = vset.pattern.permute.xlu0 0
        %358 = vperm.xlu0 %357, %v261
        %v359 = vpop.permute.xlu0 %358
        %362 = vset.pattern.permute.xlu0 0
        %363 = vperm.xlu0 %362, %v262
        %v364 = vpop.permute.xlu0 %363
        %367 = vset.pattern.permute.xlu0 0
        %368 = vperm.xlu0 %367, %v263
        %v369 = vpop.permute.xlu0 %368
        %372 = vset.pattern.permute.xlu0 0
        %373 = vperm.xlu0 %372, %v264
        %v374 = vpop.permute.xlu0 %373
        %377 = vset.pattern.permute.xlu0 0
        %378 = vperm.xlu0 %377, %v265
        %v379 = vpop.permute.xlu0 %378
        %382 = vset.pattern.permute.xlu0 0
        %383 = vperm.xlu0 %382, %v266
        %v384 = vpop.permute.xlu0 %383
        %387 = vset.pattern.permute.xlu0 0
        %388 = vperm.xlu0 %387, %v267
        %v389 = vpop.permute.xlu0 %388
        %392 = vset.pattern.permute.xlu0 0
        %393 = vperm.xlu0 %392, %v268
        %v394 = vpop.permute.xlu0 %393
        %397 = vset.pattern.permute.xlu0 0
        %398 = vperm.xlu0 %397, %v269
        %v399 = vpop.permute.xlu0 %398
        %402 = vset.pattern.permute.xlu0 0
        %403 = vperm.xlu0 %402, %v270
        %v404 = vpop.permute.xlu0 %403
        %407 = vset.pattern.permute.xlu0 0
        %408 = vperm.xlu0 %407, %v271
        %v409 = vpop.permute.xlu0 %408
        %412 = vset.pattern.permute.xlu0 0
        %413 = vperm.xlu0 %412, %v272
        %v414 = vpop.permute.xlu0 %413
        %417 = vset.pattern.permute.xlu0 0
        %418 = vperm.xlu0 %417, %v273
        %v419 = vpop.permute.xlu0 %418
        %422 = vset.pattern.permute.xlu0 0
        %423 = vperm.xlu0 %422, %v274
        %v424 = vpop.permute.xlu0 %423
        %427 = vset.pattern.permute.xlu0 0
        %428 = vperm.xlu0 %427, %v275
        %v429 = vpop.permute.xlu0 %428
        %432 = vset.pattern.permute.xlu0 0
        %433 = vperm.xlu0 %432, %v276
        %v434 = vpop.permute.xlu0 %433
        %437 = vset.pattern.permute.xlu0 0
        %438 = vperm.xlu0 %437, %v277
        %v439 = vpop.permute.xlu0 %438
        %442 = vset.pattern.permute.xlu0 0
        %443 = vperm.xlu0 %442, %v278
        %v444 = vpop.permute.xlu0 %443
        %447 = vset.pattern.permute.xlu0 0
        %448 = vperm.xlu0 %447, %v279
        %v449 = vpop.permute.xlu0 %448
        %452 = vset.pattern.permute.xlu0 0
        %453 = vperm.xlu0 %452, %v280
        %v454 = vpop.permute.xlu0 %453
        %457 = vset.pattern.permute.xlu0 0
        %458 = vperm.xlu0 %457, %v281
        %v459 = vpop.permute.xlu0 %458
        %462 = vset.pattern.permute.xlu0 0
        %463 = vperm.xlu0 %462, %v282
        %v464 = vpop.permute.xlu0 %463
        %467 = vset.pattern.permute.xlu0 0
        %468 = vperm.xlu0 %467, %v283
        %v469 = vpop.permute.xlu0 %468
        %472 = vset.pattern.permute.xlu0 0
        %473 = vperm.xlu0 %472, %v284
        %v474 = vpop.permute.xlu0 %473
        %v477 = vlaneseq
        %v478 = vshrl.u32 %v477, 7
        %v479 = vsub.s32 0, %v478
        %v480 = vrot.slane %v285, %v479
        %v482 = vmul.f32 %v289, %v480
        %v483 = vmul.f32 %v294, %v480
        %v484 = vmul.f32 %v299, %v480
        %v485 = vmul.f32 %v304, %v480
        %v486 = vmul.f32 %v309, %v480
        %v487 = vmul.f32 %v314, %v480
        %v488 = vmul.f32 %v319, %v480
        %v489 = vmul.f32 %v324, %v480
        %v490 = vmul.f32 %v329, %v480
        %v491 = vmul.f32 %v334, %v480
        %v492 = vmul.f32 %v339, %v480
        %v493 = vmul.f32 %v344, %v480
        %v494 = vmul.f32 %v349, %v480
        %v495 = vmul.f32 %v354, %v480
        %v496 = vmul.f32 %v359, %v480
        %v497 = vmul.f32 %v364, %v480
        %v498 = vmul.f32 %v369, %v480
        %v499 = vmul.f32 %v374, %v480
        %v500 = vmul.f32 %v379, %v480
        %v501 = vmul.f32 %v384, %v480
        %v502 = vmul.f32 %v389, %v480
        %v503 = vmul.f32 %v394, %v480
        %v504 = vmul.f32 %v399, %v480
        %v505 = vmul.f32 %v404, %v480
        %v506 = vmul.f32 %v409, %v480
        %v507 = vmul.f32 %v414, %v480
        %v508 = vmul.f32 %v419, %v480
        %v509 = vmul.f32 %v424, %v480
        %v510 = vmul.f32 %v429, %v480
        %v511 = vmul.f32 %v434, %v480
        %v512 = vmul.f32 %v439, %v480
        %v513 = vmul.f32 %v444, %v480
        %v514 = vmul.f32 %v449, %v480
        %v515 = vmul.f32 %v454, %v480
        %v516 = vmul.f32 %v459, %v480
        %v517 = vmul.f32 %v464, %v480
        %v518 = vmul.f32 %v469, %v480
        %v519 = vmul.f32 %v474, %v480
        %v520 = vld [vmem:[%s2] sm:$0x1]
        %v522 = vlaneseq
        %v523 = vshrl.u32 %v522, 7
        %v524 = vsub.s32 0, %v523
        %v525 = vrot.slane %v520, %v524
        %v527 = vadd.f32 %v482, %v525
        %v528 = vadd.f32 %v483, %v525
        %v529 = vadd.f32 %v484, %v525
        %v530 = vadd.f32 %v485, %v525
        %v531 = vadd.f32 %v486, %v525
        %v532 = vadd.f32 %v487, %v525
        %v533 = vadd.f32 %v488, %v525
        %v534 = vadd.f32 %v489, %v525
        %v535 = vadd.f32 %v490, %v525
        %v536 = vadd.f32 %v491, %v525
        %v537 = vadd.f32 %v492, %v525
        %v538 = vadd.f32 %v493, %v525
        %v539 = vadd.f32 %v494, %v525
        %v540 = vadd.f32 %v495, %v525
        %v541 = vadd.f32 %v496, %v525
        %v542 = vadd.f32 %v497, %v525
        %v543 = vadd.f32 %v498, %v525
        %v544 = vadd.f32 %v499, %v525
        %v545 = vadd.f32 %v500, %v525
        %v546 = vadd.f32 %v501, %v525
        %v547 = vadd.f32 %v502, %v525
        %v548 = vadd.f32 %v503, %v525
        %v549 = vadd.f32 %v504, %v525
        %v550 = vadd.f32 %v505, %v525
        %v551 = vadd.f32 %v506, %v525
        %v552 = vadd.f32 %v507, %v525
        %v553 = vadd.f32 %v508, %v525
        %v554 = vadd.f32 %v509, %v525
        %v555 = vadd.f32 %v510, %v525
        %v556 = vadd.f32 %v511, %v525
        %v557 = vadd.f32 %v512, %v525
        %v558 = vadd.f32 %v513, %v525
        %v559 = vadd.f32 %v514, %v525
        %v560 = vadd.f32 %v515, %v525
        %v561 = vadd.f32 %v516, %v525
        %v562 = vadd.f32 %v517, %v525
        %v563 = vadd.f32 %v518, %v525
        %v564 = vadd.f32 %v519, %v525
        %v565 = vmax.f32 %v527, 0.0
        %v566 = vmax.f32 %v528, 0.0
        %v567 = vmax.f32 %v529, 0.0
        %v568 = vmax.f32 %v530, 0.0
        %v569 = vmax.f32 %v531, 0.0
        %v570 = vmax.f32 %v532, 0.0
        %v571 = vmax.f32 %v533, 0.0
        %v572 = vmax.f32 %v534, 0.0
        %v573 = vmax.f32 %v535, 0.0
        %v574 = vmax.f32 %v536, 0.0
        %v575 = vmax.f32 %v537, 0.0
        %v576 = vmax.f32 %v538, 0.0
        %v577 = vmax.f32 %v539, 0.0
        %v578 = vmax.f32 %v540, 0.0
        %v579 = vmax.f32 %v541, 0.0
        %v580 = vmax.f32 %v542, 0.0
        %v581 = vmax.f32 %v543, 0.0
        %v582 = vmax.f32 %v544, 0.0
        %v583 = vmax.f32 %v545, 0.0
        %v584 = vmax.f32 %v546, 0.0
        %v585 = vmax.f32 %v547, 0.0
        %v586 = vmax.f32 %v548, 0.0
        %v587 = vmax.f32 %v549, 0.0
        %v588 = vmax.f32 %v550, 0.0
        %v589 = vmax.f32 %v551, 0.0
        %v590 = vmax.f32 %v552, 0.0
        %v591 = vmax.f32 %v553, 0.0
        %v592 = vmax.f32 %v554, 0.0
        %v593 = vmax.f32 %v555, 0.0
        %v594 = vmax.f32 %v556, 0.0
        %v595 = vmax.f32 %v557, 0.0
        %v596 = vmax.f32 %v558, 0.0
        %v597 = vmax.f32 %v559, 0.0
        %v598 = vmax.f32 %v560, 0.0
        %v599 = vmax.f32 %v561, 0.0
        %v600 = vmax.f32 %v562, 0.0
        %v601 = vmax.f32 %v563, 0.0
        %v602 = vmax.f32 %v564, 0.0
        %v603 = vpack.c.bf16 %v566, %v565
        %v604 = vpack.c.bf16 %v568, %v567
        %v605 = vpack.c.bf16 %v570, %v569
        %v606 = vpack.c.bf16 %v572, %v571
        %v607 = vpack.c.bf16 %v574, %v573
        %v608 = vpack.c.bf16 %v576, %v575
        %v609 = vpack.c.bf16 %v578, %v577
        %v610 = vpack.c.bf16 %v580, %v579
        %v611 = vpack.c.bf16 %v582, %v581
        %v612 = vpack.c.bf16 %v584, %v583
        %v613 = vpack.c.bf16 %v586, %v585
        %v614 = vpack.c.bf16 %v588, %v587
        %v615 = vpack.c.bf16 %v590, %v589
        %v616 = vpack.c.bf16 %v592, %v591
        %v617 = vpack.c.bf16 %v594, %v593
        %v618 = vpack.c.bf16 %v596, %v595
        %v619 = vpack.c.bf16 %v598, %v597
        %v620 = vpack.c.bf16 %v600, %v599
        %v621 = vpack.c.bf16 %v602, %v601
        %v622 = vld [vmem:[%s3] sm:$0xf]
        %v623 = vld [vmem:[%s3 + $0x4] sm:$0xf]
        %v624 = vld [vmem:[%s3 + $0x8] sm:$0xf]
        %v625 = vld [vmem:[%s3 + $0xc] sm:$0xf]
        %v626 = vld [vmem:[%s3 + $0x10] sm:$0xf]
        %v627 = vld [vmem:[%s3 + $0x14] sm:$0xf]
        %v628 = vld [vmem:[%s3 + $0x18] sm:$0xf]
        %v629 = vld [vmem:[%s3 + $0x1c] sm:$0xf]
        %v630 = vld [vmem:[%s3 + $0x20] sm:$0xf]
        %v631 = vld [vmem:[%s3 + $0x24] sm:$0xf]
        %v632 = vld [vmem:[%s3 + $0x28] sm:$0xf]
        %v633 = vld [vmem:[%s3 + $0x2c] sm:$0xf]
        %v634 = vld [vmem:[%s3 + $0x30] sm:$0xf]
        %v635 = vld [vmem:[%s3 + $0x34] sm:$0xf]
        %v636 = vld [vmem:[%s3 + $0x38] sm:$0xf]
        %v637 = vld [vmem:[%s3 + $0x3c] sm:$0xf]
        %v638 = vld [vmem:[%s4] sm:$0x1]
        %v640 = vlaneseq
        %v641 = vshrl.u32 %v640, 7
        %v642 = vsub.s32 0, %v641
        %v643 = vrot.slane %v638, %v642
        %v661 = vunpack.c.l.b16 %v622
        %v662 = vunpack.c.l.b16 %v623
        %v663 = vunpack.c.l.b16 %v624
        %v664 = vunpack.c.l.b16 %v625
        %v665 = vunpack.c.l.b16 %v626
        %v666 = vunpack.c.l.b16 %v627
        %v667 = vunpack.c.l.b16 %v628
        %v668 = vunpack.c.l.b16 %v629
        %v669 = vunpack.c.l.b16 %v630
        %v670 = vunpack.c.l.b16 %v631
        %v671 = vunpack.c.l.b16 %v632
        %v672 = vunpack.c.l.b16 %v633
        %v673 = vunpack.c.l.b16 %v634
        %v674 = vunpack.c.l.b16 %v635
        %v675 = vunpack.c.l.b16 %v636
        %v676 = vunpack.c.l.b16 %v637
        %v677 = vpack.c.b16 %v662, %v661
        %v678 = vpack.c.b16 %v664, %v663
        %v679 = vpack.c.b16 %v666, %v665
        %v680 = vpack.c.b16 %v668, %v667
        %v681 = vpack.c.b16 %v670, %v669
        %v682 = vpack.c.b16 %v672, %v671
        %v683 = vpack.c.b16 %v674, %v673
        %v684 = vpack.c.b16 %v676, %v675
        %693 = vmatprep.subr.bf16.mxu0 0
        %694 = vmatpush1.bf16.msra.mxu0 %v677
        %695 = vmatprep.subr.bf16.mxu0 0
        %696 = vmatpush1.bf16.msra.mxu0 %v678
        %697 = vmatprep.subr.bf16.mxu0 0
        %698 = vmatpush1.bf16.msra.mxu0 %v679
        %699 = vmatprep.subr.bf16.mxu0 0
        %700 = vmatpush1.bf16.msra.mxu0 %v680
        %701 = vmatprep.subr.bf16.mxu0 0
        %702 = vmatpush1.bf16.msra.mxu0 %v681
        %703 = vmatprep.subr.bf16.mxu0 0
        %704 = vmatpush1.bf16.msra.mxu0 %v682
        %705 = vmatprep.subr.bf16.mxu0 0
        %706 = vmatpush1.bf16.msra.mxu0 %v683
        %707 = vmatprep.subr.bf16.mxu0 0
        %708 = vmatpush1.bf16.msra.mxu0 %v684
        %709 = vmatprep.subr.bf16.mxu0 0
        %710 = vmatpush1.bf16.msra.mxu0 0
        %711 = vmatprep.subr.bf16.mxu0 0
        %712 = vmatpush1.bf16.msra.mxu0 0
        %713 = vmatprep.subr.bf16.mxu0 0
        %714 = vmatpush1.bf16.msra.mxu0 0
        %715 = vmatprep.subr.bf16.mxu0 0
        %716 = vmatpush1.bf16.msra.mxu0 0
        %717 = vmatprep.subr.bf16.mxu0 0
        %718 = vmatpush1.bf16.msra.mxu0 0
        %719 = vmatprep.subr.bf16.mxu0 0
        %720 = vmatpush1.bf16.msra.mxu0 0
        %721 = vmatprep.subr.bf16.mxu0 0
        %722 = vmatpush1.bf16.msra.mxu0 0
        %723 = vmatprep.subr.bf16.mxu0 0
        %724 = vmatpush1.bf16.msra.mxu0 0
        %725 = vmatprep.mubr.bf16.mxu0 0
        %726 = vmatmul.mubr.bf16.gmra.mrb[0].mxu0 %v603
        %v727 = vpop.f32.mrb[0].mxu0
        %v728 = vadd.f32 %v643, %v727
        %v729 = vpop.f32.mrb[0].mxu0
        %v730 = vpop.f32.mrb[0].mxu0
        %v731 = vadd.f32 %v643, %v730
        %v732 = vpop.f32.mrb[0].mxu0
        %733 = vmatprep.mubr.bf16.mxu0 0
        %734 = vmatmul.mubr.bf16.gmra.mrb[0].mxu0 %v604
        %v735 = vpop.f32.mrb[0].mxu0
        %v736 = vadd.f32 %v643, %v735
        %v737 = vpop.f32.mrb[0].mxu0
        %v738 = vpop.f32.mrb[0].mxu0
        %v739 = vadd.f32 %v643, %v738
        %v740 = vpop.f32.mrb[0].mxu0
        %741 = vmatprep.mubr.bf16.mxu0 0
        %742 = vmatmul.mubr.bf16.gmra.mrb[0].mxu0 %v605
        %v743 = vpop.f32.mrb[0].mxu0
        %v744 = vadd.f32 %v643, %v743
        %v745 = vpop.f32.mrb[0].mxu0
        %v746 = vpop.f32.mrb[0].mxu0
        %v747 = vadd.f32 %v643, %v746
        %v748 = vpop.f32.mrb[0].mxu0
        %749 = vmatprep.mubr.bf16.mxu0 0
        %750 = vmatmul.mubr.bf16.gmra.mrb[0].mxu0 %v606
        %v751 = vpop.f32.mrb[0].mxu0
        %v752 = vadd.f32 %v643, %v751
        %v753 = vpop.f32.mrb[0].mxu0
        %v754 = vpop.f32.mrb[0].mxu0
        %v755 = vadd.f32 %v643, %v754
        %v756 = vpop.f32.mrb[0].mxu0
        %757 = vmatprep.mubr.bf16.mxu0 0
        %758 = vmatmul.mubr.bf16.gmra.mrb[0].mxu0 %v607
        %v759 = vpop.f32.mrb[0].mxu0
        %v760 = vadd.f32 %v643, %v759
        %v761 = vpop.f32.mrb[0].mxu0
        %v762 = vpop.f32.mrb[0].mxu0
        %v763 = vadd.f32 %v643, %v762
        %v764 = vpop.f32.mrb[0].mxu0
        %765 = vmatprep.mubr.bf16.mxu0 0
        %766 = vmatmul.mubr.bf16.gmra.mrb[0].mxu0 %v608
        %v767 = vpop.f32.mrb[0].mxu0
        %v768 = vadd.f32 %v643, %v767
        %v769 = vpop.f32.mrb[0].mxu0
        %v770 = vpop.f32.mrb[0].mxu0
        %v771 = vadd.f32 %v643, %v770
        %v772 = vpop.f32.mrb[0].mxu0
        %773 = vmatprep.mubr.bf16.mxu0 0
        %774 = vmatmul.mubr.bf16.gmra.mrb[0].mxu0 %v609
        %v775 = vpop.f32.mrb[0].mxu0
        %v776 = vadd.f32 %v643, %v775
        %v777 = vpop.f32.mrb[0].mxu0
        %v778 = vpop.f32.mrb[0].mxu0
        %v779 = vadd.f32 %v643, %v778
        %v780 = vpop.f32.mrb[0].mxu0
        %781 = vmatprep.mubr.bf16.mxu0 0
        %782 = vmatmul.mubr.bf16.gmra.mrb[0].mxu0 %v610
        %v783 = vpop.f32.mrb[0].mxu0
        %v784 = vadd.f32 %v643, %v783
        %v785 = vpop.f32.mrb[0].mxu0
        %v786 = vpop.f32.mrb[0].mxu0
        %v787 = vadd.f32 %v643, %v786
        %v788 = vpop.f32.mrb[0].mxu0
        %789 = vmatprep.mubr.bf16.mxu0 0
        %790 = vmatmul.mubr.bf16.gmra.mrb[0].mxu0 %v611
        %v791 = vpop.f32.mrb[0].mxu0
        %v792 = vadd.f32 %v643, %v791
        %v793 = vpop.f32.mrb[0].mxu0
        %v794 = vpop.f32.mrb[0].mxu0
        %v795 = vadd.f32 %v643, %v794
        %v796 = vpop.f32.mrb[0].mxu0
        %797 = vmatprep.mubr.bf16.mxu0 0
        %798 = vmatmul.mubr.bf16.gmra.mrb[0].mxu0 %v612
        %v799 = vpop.f32.mrb[0].mxu0
        %v800 = vadd.f32 %v643, %v799
        %v801 = vpop.f32.mrb[0].mxu0
        %v802 = vpop.f32.mrb[0].mxu0
        %v803 = vadd.f32 %v643, %v802
        %v804 = vpop.f32.mrb[0].mxu0
        %805 = vmatprep.mubr.bf16.mxu0 0
        %806 = vmatmul.mubr.bf16.gmra.mrb[0].mxu0 %v613
        %v807 = vpop.f32.mrb[0].mxu0
        %v808 = vadd.f32 %v643, %v807
        %v809 = vpop.f32.mrb[0].mxu0
        %v810 = vpop.f32.mrb[0].mxu0
        %v811 = vadd.f32 %v643, %v810
        %v812 = vpop.f32.mrb[0].mxu0
        %813 = vmatprep.mubr.bf16.mxu0 0
        %814 = vmatmul.mubr.bf16.gmra.mrb[0].mxu0 %v614
        %v815 = vpop.f32.mrb[0].mxu0
        %v816 = vadd.f32 %v643, %v815
        %v817 = vpop.f32.mrb[0].mxu0
        %v818 = vpop.f32.mrb[0].mxu0
        %v819 = vadd.f32 %v643, %v818
        %v820 = vpop.f32.mrb[0].mxu0
        %821 = vmatprep.mubr.bf16.mxu0 0
        %822 = vmatmul.mubr.bf16.gmra.mrb[0].mxu0 %v615
        %v823 = vpop.f32.mrb[0].mxu0
        %v824 = vadd.f32 %v643, %v823
        %v825 = vpop.f32.mrb[0].mxu0
        %v826 = vpop.f32.mrb[0].mxu0
        %v827 = vadd.f32 %v643, %v826
        %v828 = vpop.f32.mrb[0].mxu0
        %829 = vmatprep.mubr.bf16.mxu0 0
        %830 = vmatmul.mubr.bf16.gmra.mrb[0].mxu0 %v616
        %v831 = vpop.f32.mrb[0].mxu0
        %v832 = vadd.f32 %v643, %v831
        %v833 = vpop.f32.mrb[0].mxu0
        %v834 = vpop.f32.mrb[0].mxu0
        %v835 = vadd.f32 %v643, %v834
        %v836 = vpop.f32.mrb[0].mxu0
        %837 = vmatprep.mubr.bf16.mxu0 0
        %838 = vmatmul.mubr.bf16.gmra.mrb[0].mxu0 %v617
        %v839 = vpop.f32.mrb[0].mxu0
        %v840 = vadd.f32 %v643, %v839
        %v841 = vpop.f32.mrb[0].mxu0
        %v842 = vpop.f32.mrb[0].mxu0
        %v843 = vadd.f32 %v643, %v842
        %v844 = vpop.f32.mrb[0].mxu0
        %845 = vmatprep.mubr.bf16.mxu0 0
        %846 = vmatmul.mubr.bf16.gmra.mrb[0].mxu0 %v618
        %v847 = vpop.f32.mrb[0].mxu0
        %v848 = vadd.f32 %v643, %v847
        %v849 = vpop.f32.mrb[0].mxu0
        %v850 = vpop.f32.mrb[0].mxu0
        %v851 = vadd.f32 %v643, %v850
        %v852 = vpop.f32.mrb[0].mxu0
        %853 = vmatprep.mubr.bf16.mxu0 0
        %854 = vmatmul.mubr.bf16.gmra.mrb[0].mxu0 %v619
        %v855 = vpop.f32.mrb[0].mxu0
        %v856 = vadd.f32 %v643, %v855
        %v857 = vpop.f32.mrb[0].mxu0
        %v858 = vpop.f32.mrb[0].mxu0
        %v859 = vadd.f32 %v643, %v858
        %v860 = vpop.f32.mrb[0].mxu0
        %861 = vmatprep.mubr.bf16.mxu0 0
        %862 = vmatmul.mubr.bf16.gmra.mrb[0].mxu0 %v620
        %v863 = vpop.f32.mrb[0].mxu0
        %v864 = vadd.f32 %v643, %v863
        %v865 = vpop.f32.mrb[0].mxu0
        %v866 = vpop.f32.mrb[0].mxu0
        %v867 = vadd.f32 %v643, %v866
        %v868 = vpop.f32.mrb[0].mxu0
        %869 = vmatprep.mubr.bf16.mxu0 0
        %870 = vmatmul.mubr.bf16.gmra.mrb[0].mxu0 %v621
        %v871 = vpop.f32.mrb[0].mxu0
        %v872 = vadd.f32 %v643, %v871
        %v873 = vpop.f32.mrb[0].mxu0
        %v874 = vpop.f32.mrb[0].mxu0
        %v875 = vadd.f32 %v643, %v874
        %v876 = vpop.f32.mrb[0].mxu0
        %877 = vdwg.mxu0
        %vm878 = vcmask 523264
        %879 = vst.msk [vmem:[%s226] sm:$0xff] %vm878, %v728
        %880 = vst.msk [vmem:[%s226 + $0x8] sm:$0xff] %vm878, %v731
        %881 = vst.msk [vmem:[%s226 + $0x10] sm:$0xff] %vm878, %v736
        %882 = vst.msk [vmem:[%s226 + $0x18] sm:$0xff] %vm878, %v739
        %883 = vst.msk [vmem:[%s226 + $0x20] sm:$0xff] %vm878, %v744
        %884 = vst.msk [vmem:[%s226 + $0x28] sm:$0xff] %vm878, %v747
        %885 = vst.msk [vmem:[%s226 + $0x30] sm:$0xff] %vm878, %v752
        %886 = vst.msk [vmem:[%s226 + $0x38] sm:$0xff] %vm878, %v755
        %887 = vst.msk [vmem:[%s226 + $0x40] sm:$0xff] %vm878, %v760
        %888 = vst.msk [vmem:[%s226 + $0x48] sm:$0xff] %vm878, %v763
        %889 = vst.msk [vmem:[%s226 + $0x50] sm:$0xff] %vm878, %v768
        %890 = vst.msk [vmem:[%s226 + $0x58] sm:$0xff] %vm878, %v771
        %891 = vst.msk [vmem:[%s226 + $0x60] sm:$0xff] %vm878, %v776
        %892 = vst.msk [vmem:[%s226 + $0x68] sm:$0xff] %vm878, %v779
        %893 = vst.msk [vmem:[%s226 + $0x70] sm:$0xff] %vm878, %v784
        %894 = vst.msk [vmem:[%s226 + $0x78] sm:$0xff] %vm878, %v787
        %895 = vst.msk [vmem:[%s226 + $0x80] sm:$0xff] %vm878, %v792
        %896 = vst.msk [vmem:[%s226 + $0x88] sm:$0xff] %vm878, %v795
        %897 = vst.msk [vmem:[%s226 + $0x90] sm:$0xff] %vm878, %v800
        %898 = vst.msk [vmem:[%s226 + $0x98] sm:$0xff] %vm878, %v803
        %899 = vst.msk [vmem:[%s226 + $0xa0] sm:$0xff] %vm878, %v808
        %900 = vst.msk [vmem:[%s226 + $0xa8] sm:$0xff] %vm878, %v811
        %901 = vst.msk [vmem:[%s226 + $0xb0] sm:$0xff] %vm878, %v816
        %902 = vst.msk [vmem:[%s226 + $0xb8] sm:$0xff] %vm878, %v819
        %903 = vst.msk [vmem:[%s226 + $0xc0] sm:$0xff] %vm878, %v824
        %904 = vst.msk [vmem:[%s226 + $0xc8] sm:$0xff] %vm878, %v827
        %905 = vst.msk [vmem:[%s226 + $0xd0] sm:$0xff] %vm878, %v832
        %906 = vst.msk [vmem:[%s226 + $0xd8] sm:$0xff] %vm878, %v835
        %907 = vst.msk [vmem:[%s226 + $0xe0] sm:$0xff] %vm878, %v840
        %908 = vst.msk [vmem:[%s226 + $0xe8] sm:$0xff] %vm878, %v843
        %909 = vst.msk [vmem:[%s226 + $0xf0] sm:$0xff] %vm878, %v848
        %910 = vst.msk [vmem:[%s226 + $0xf8] sm:$0xff] %vm878, %v851
        %911 = vst.msk [vmem:[%s226 + $0x100] sm:$0xff] %vm878, %v856
        %912 = vst.msk [vmem:[%s226 + $0x108] sm:$0xff] %vm878, %v859
        %913 = vst.msk [vmem:[%s226 + $0x110] sm:$0xff] %vm878, %v864
        %914 = vst.msk [vmem:[%s226 + $0x118] sm:$0xff] %vm878, %v867
        %915 = vst.msk [vmem:[%s226 + $0x120] sm:$0xff] %vm878, %v872
        %916 = vst.msk [vmem:[%s226 + $0x128] sm:$0xff] %vm878, %v875
        %s917 = sand.u32 %s134, 1
        %s918 = sand.u32 %s134, 1
        %s919 = smul.addr %s918, 304
        %s920 = scalar_lea.vmem [#allocation2], %s919
        // Predicated region
        $region41: #{tpu_custom_call.1} parent=39 // pred_check
          %p921 = pneg %p144
        $region42: #{tpu_custom_call.1} parent=39 // pred_check_branch
          %923 = sbr.rel (%p921) target = $region44
        $region43: #{tpu_custom_call.1} parent=39 // pred_region
          %s924 = smul.u32 38, %s16
          %s925 = ssub.s32 75, %s924
          %p926 = scmp.lt.s32.totalorder %s925, 38
          %s927 = scalar_select %p926, %s925, 38
          %s928 = smul.u32 128, %s927
          %p929 = scmp.ne.s32.totalorder 0, %s928
          %s930 = smul.addr %s924, 8
          %s931 = scalar_lea.vmem %s5, %s930
          // Predicated region
          $region45: #{tpu_custom_call.1} parent=43 // pred_check
            %p932 = pneg %p929
          $region46: #{tpu_custom_call.1} parent=43 // pred_check_branch
            %934 = sbr.rel (%p932) target = $region48
          $region47: #{tpu_custom_call.1} parent=43 // pred_region
            // Predicated region
            $region49: #{tpu_custom_call.1} parent=47 // pred_check
              _
            $region50: #{tpu_custom_call.1} parent=47 // pred_check_branch
              %936 = sbr.rel (0) target = $region52
            $region51: #{tpu_custom_call.1} parent=47 // pred_region
              // Predicated region
              $region71: #{tpu_custom_call.1} parent=51 // pred_check
                _
              $region72: #{tpu_custom_call.1} parent=51 // pred_check_branch
                %1060 = sbr.rel (0) target = $region74
              $region73: #{tpu_custom_call.1} parent=51 // pred_region
                %s1061 = sdiv.u32.pop %s927, 38
                %s1062 = srem.u32.pop %s927, 38
                // While loop
                $region75: #{tpu_custom_call.1} parent=73 // loop_pre_header
                  _
                $region76: #{tpu_custom_call.1} parent=73 // loop_header
                  %s1064 = sphi 0, %s1066
                  %p1065 = scmp.ge.s32.totalorder %s1064, %s1061
                  %s1069 = sphi 0, %s1150
                  %s1070 = sphi %s920, %s1153
                  %s1071 = sphi %s931, %s1154
                $region77: #{tpu_custom_call.1} parent=73 // loop_header_branch
                  %1068 = sbr.rel (%p1065) target = $region81
                $region78: #{tpu_custom_call.1} parent=73 // loop_body
                  %v1072 = vld [vmem:[%s1070] sm:$0xff]
                  %1073 = vst [vmem:[%s1071] sm:$0xff] %v1072
                  %v1074 = vld [vmem:[%s1070 + $0x8] sm:$0xff]
                  %1075 = vst [vmem:[%s1071 + $0x8] sm:$0xff] %v1074
                  %v1076 = vld [vmem:[%s1070 + $0x10] sm:$0xff]
                  %1077 = vst [vmem:[%s1071 + $0x10] sm:$0xff] %v1076
                  %v1078 = vld [vmem:[%s1070 + $0x18] sm:$0xff]
                  %1079 = vst [vmem:[%s1071 + $0x18] sm:$0xff] %v1078
                  %v1080 = vld [vmem:[%s1070 + $0x20] sm:$0xff]
                  %1081 = vst [vmem:[%s1071 + $0x20] sm:$0xff] %v1080
                  %v1082 = vld [vmem:[%s1070 + $0x28] sm:$0xff]
                  %1083 = vst [vmem:[%s1071 + $0x28] sm:$0xff] %v1082
                  %v1084 = vld [vmem:[%s1070 + $0x30] sm:$0xff]
                  %1085 = vst [vmem:[%s1071 + $0x30] sm:$0xff] %v1084
                  %v1086 = vld [vmem:[%s1070 + $0x38] sm:$0xff]
                  %1087 = vst [vmem:[%s1071 + $0x38] sm:$0xff] %v1086
                  %v1088 = vld [vmem:[%s1070 + $0x40] sm:$0xff]
                  %1089 = vst [vmem:[%s1071 + $0x40] sm:$0xff] %v1088
                  %v1090 = vld [vmem:[%s1070 + $0x48] sm:$0xff]
                  %1091 = vst [vmem:[%s1071 + $0x48] sm:$0xff] %v1090
                  %v1092 = vld [vmem:[%s1070 + $0x50] sm:$0xff]
                  %1093 = vst [vmem:[%s1071 + $0x50] sm:$0xff] %v1092
                  %v1094 = vld [vmem:[%s1070 + $0x58] sm:$0xff]
                  %1095 = vst [vmem:[%s1071 + $0x58] sm:$0xff] %v1094
                  %v1096 = vld [vmem:[%s1070 + $0x60] sm:$0xff]
                  %1097 = vst [vmem:[%s1071 + $0x60] sm:$0xff] %v1096
                  %v1098 = vld [vmem:[%s1070 + $0x68] sm:$0xff]
                  %1099 = vst [vmem:[%s1071 + $0x68] sm:$0xff] %v1098
                  %v1100 = vld [vmem:[%s1070 + $0x70] sm:$0xff]
                  %1101 = vst [vmem:[%s1071 + $0x70] sm:$0xff] %v1100
                  %v1102 = vld [vmem:[%s1070 + $0x78] sm:$0xff]
                  %1103 = vst [vmem:[%s1071 + $0x78] sm:$0xff] %v1102
                  %v1104 = vld [vmem:[%s1070 + $0x80] sm:$0xff]
                  %1105 = vst [vmem:[%s1071 + $0x80] sm:$0xff] %v1104
                  %v1106 = vld [vmem:[%s1070 + $0x88] sm:$0xff]
                  %1107 = vst [vmem:[%s1071 + $0x88] sm:$0xff] %v1106
                  %v1108 = vld [vmem:[%s1070 + $0x90] sm:$0xff]
                  %1109 = vst [vmem:[%s1071 + $0x90] sm:$0xff] %v1108
                  %v1110 = vld [vmem:[%s1070 + $0x98] sm:$0xff]
                  %1111 = vst [vmem:[%s1071 + $0x98] sm:$0xff] %v1110
                  %v1112 = vld [vmem:[%s1070 + $0xa0] sm:$0xff]
                  %1113 = vst [vmem:[%s1071 + $0xa0] sm:$0xff] %v1112
                  %v1114 = vld [vmem:[%s1070 + $0xa8] sm:$0xff]
                  %1115 = vst [vmem:[%s1071 + $0xa8] sm:$0xff] %v1114
                  %v1116 = vld [vmem:[%s1070 + $0xb0] sm:$0xff]
                  %1117 = vst [vmem:[%s1071 + $0xb0] sm:$0xff] %v1116
                  %v1118 = vld [vmem:[%s1070 + $0xb8] sm:$0xff]
                  %1119 = vst [vmem:[%s1071 + $0xb8] sm:$0xff] %v1118
                  %v1120 = vld [vmem:[%s1070 + $0xc0] sm:$0xff]
                  %1121 = vst [vmem:[%s1071 + $0xc0] sm:$0xff] %v1120
                  %v1122 = vld [vmem:[%s1070 + $0xc8] sm:$0xff]
                  %1123 = vst [vmem:[%s1071 + $0xc8] sm:$0xff] %v1122
                  %v1124 = vld [vmem:[%s1070 + $0xd0] sm:$0xff]
                  %1125 = vst [vmem:[%s1071 + $0xd0] sm:$0xff] %v1124
                  %v1126 = vld [vmem:[%s1070 + $0xd8] sm:$0xff]
                  %1127 = vst [vmem:[%s1071 + $0xd8] sm:$0xff] %v1126
                  %v1128 = vld [vmem:[%s1070 + $0xe0] sm:$0xff]
                  %1129 = vst [vmem:[%s1071 + $0xe0] sm:$0xff] %v1128
                  %v1130 = vld [vmem:[%s1070 + $0xe8] sm:$0xff]
                  %1131 = vst [vmem:[%s1071 + $0xe8] sm:$0xff] %v1130
                  %v1132 = vld [vmem:[%s1070 + $0xf0] sm:$0xff]
                  %1133 = vst [vmem:[%s1071 + $0xf0] sm:$0xff] %v1132
                  %v1134 = vld [vmem:[%s1070 + $0xf8] sm:$0xff]
                  %1135 = vst [vmem:[%s1071 + $0xf8] sm:$0xff] %v1134
                  %v1136 = vld [vmem:[%s1070 + $0x100] sm:$0xff]
                  %1137 = vst [vmem:[%s1071 + $0x100] sm:$0xff] %v1136
                  %v1138 = vld [vmem:[%s1070 + $0x108] sm:$0xff]
                  %1139 = vst [vmem:[%s1071 + $0x108] sm:$0xff] %v1138
                  %v1140 = vld [vmem:[%s1070 + $0x110] sm:$0xff]
                  %1141 = vst [vmem:[%s1071 + $0x110] sm:$0xff] %v1140
                  %v1142 = vld [vmem:[%s1070 + $0x118] sm:$0xff]
                  %1143 = vst [vmem:[%s1071 + $0x118] sm:$0xff] %v1142
                  %v1144 = vld [vmem:[%s1070 + $0x120] sm:$0xff]
                  %1145 = vst [vmem:[%s1071 + $0x120] sm:$0xff] %v1144
                  %v1146 = vld [vmem:[%s1070 + $0x128] sm:$0xff]
                  %1147 = vst [vmem:[%s1071 + $0x128] sm:$0xff] %v1146
                  %s1148 = sadd.s32 1, %s1069
                  %p1149 = scmp.ge.s32.totalorder %s1148, %s1061
                  %s1150 = scalar_select %p1149, 0, %s1148
                  %s1151 = smul.u32 %s1150, 304
                  %s1152 = smul.u32 %s1150, 304
                  %s1153 = scalar_lea.vmem %s920, %s1151 [#allocation2]
                  %s1154 = scalar_lea.vmem %s931, %s1152
                $region79: #{tpu_custom_call.1} parent=73 // loop_footer
                  %s1066 = sadd.s32 %s1064, 1
                $region80: #{tpu_custom_call.1} parent=73 // loop_footer_branch
                  %1063 = sbr.rel target = $region76
                $region81: #{tpu_custom_call.1} parent=73 // loop_exit
                  _
                %s1155 = sdiv.u32.pop %s927, 38
                %s1156 = srem.u32.pop %s927, 38
                %s1157 = smul.u32 %s1155, 38
                %s1158 = smul.u32 8, %s1157
                %s1159 = scalar_lea.vmem %s920, %s1158 [#allocation2]
                %s1160 = smul.u32 8, %s1157
                %s1161 = scalar_lea.vmem %s931, %s1160
                // While loop
                $region82: #{tpu_custom_call.1} parent=73 // loop_pre_header
                  _
                $region83: #{tpu_custom_call.1} parent=73 // loop_header
                  %s1163 = sphi 0, %s1165
                  %p1164 = scmp.ge.s32.totalorder %s1163, %s1156
                  %s1168 = sphi 0, %s1175
                  %s1169 = sphi %s1159, %s1178
                  %s1170 = sphi %s1161, %s1179
                $region84: #{tpu_custom_call.1} parent=73 // loop_header_branch
                  %1167 = sbr.rel (%p1164) target = $region88
                $region85: #{tpu_custom_call.1} parent=73 // loop_body
                  %v1171 = vld [vmem:[%s1169] sm:$0xff]
                  %1172 = vst [vmem:[%s1170] sm:$0xff] %v1171
                  %s1173 = sadd.s32 1, %s1168
                  %p1174 = scmp.ge.s32.totalorder %s1173, %s1156
                  %s1175 = scalar_select %p1174, 0, %s1173
                  %s1176 = smul.u32 %s1175, 8
                  %s1177 = smul.u32 %s1175, 8
                  %s1178 = scalar_lea.vmem %s1159, %s1176 [#allocation2]
                  %s1179 = scalar_lea.vmem %s1161, %s1177
                $region86: #{tpu_custom_call.1} parent=73 // loop_footer
                  %s1165 = sadd.s32 %s1163, 1
                $region87: #{tpu_custom_call.1} parent=73 // loop_footer_branch
                  %1162 = sbr.rel target = $region83
                $region88: #{tpu_custom_call.1} parent=73 // loop_exit
                  _
              $region74: #{tpu_custom_call.1} parent=51 // pred_fallthru
                _
              // Predicated region
              $region89: #{tpu_custom_call.1} parent=51 // pred_check
                _
              $region90: #{tpu_custom_call.1} parent=51 // pred_check_branch
                %1181 = sbr.rel target = $region92
              $region91: #{tpu_custom_call.1} parent=51 // pred_region
                _
              $region92: #{tpu_custom_call.1} parent=51 // pred_fallthru
                _
            $region52: #{tpu_custom_call.1} parent=47 // pred_fallthru
              _
            // Predicated region
            $region53: #{tpu_custom_call.1} parent=47 // pred_check
              _
            $region54: #{tpu_custom_call.1} parent=47 // pred_check_branch
              %938 = sbr.rel target = $region56
            $region55: #{tpu_custom_call.1} parent=47 // pred_region
              %s940 = sdiv.u32.pop %s927, 38
              %s941 = srem.u32.pop %s927, 38
              // While loop
              $region57: #{tpu_custom_call.1} parent=55 // loop_pre_header
                _
              $region58: #{tpu_custom_call.1} parent=55 // loop_header
                %s943 = sphi 0, %s945
                %p944 = scmp.ge.s32.totalorder %s943, %s940
                %s948 = sphi 0, %s1029
                %s949 = sphi %s920, %s1032
                %s950 = sphi %s931, %s1033
              $region59: #{tpu_custom_call.1} parent=55 // loop_header_branch
                %947 = sbr.rel (%p944) target = $region63
              $region60: #{tpu_custom_call.1} parent=55 // loop_body
                %v951 = vld [vmem:[%s949] sm:$0xff]
                %952 = vst [vmem:[%s950] sm:$0xff] %v951
                %v953 = vld [vmem:[%s949 + $0x8] sm:$0xff]
                %954 = vst [vmem:[%s950 + $0x8] sm:$0xff] %v953
                %v955 = vld [vmem:[%s949 + $0x10] sm:$0xff]
                %956 = vst [vmem:[%s950 + $0x10] sm:$0xff] %v955
                %v957 = vld [vmem:[%s949 + $0x18] sm:$0xff]
                %958 = vst [vmem:[%s950 + $0x18] sm:$0xff] %v957
                %v959 = vld [vmem:[%s949 + $0x20] sm:$0xff]
                %960 = vst [vmem:[%s950 + $0x20] sm:$0xff] %v959
                %v961 = vld [vmem:[%s949 + $0x28] sm:$0xff]
                %962 = vst [vmem:[%s950 + $0x28] sm:$0xff] %v961
                %v963 = vld [vmem:[%s949 + $0x30] sm:$0xff]
                %964 = vst [vmem:[%s950 + $0x30] sm:$0xff] %v963
                %v965 = vld [vmem:[%s949 + $0x38] sm:$0xff]
                %966 = vst [vmem:[%s950 + $0x38] sm:$0xff] %v965
                %v967 = vld [vmem:[%s949 + $0x40] sm:$0xff]
                %968 = vst [vmem:[%s950 + $0x40] sm:$0xff] %v967
                %v969 = vld [vmem:[%s949 + $0x48] sm:$0xff]
                %970 = vst [vmem:[%s950 + $0x48] sm:$0xff] %v969
                %v971 = vld [vmem:[%s949 + $0x50] sm:$0xff]
                %972 = vst [vmem:[%s950 + $0x50] sm:$0xff] %v971
                %v973 = vld [vmem:[%s949 + $0x58] sm:$0xff]
                %974 = vst [vmem:[%s950 + $0x58] sm:$0xff] %v973
                %v975 = vld [vmem:[%s949 + $0x60] sm:$0xff]
                %976 = vst [vmem:[%s950 + $0x60] sm:$0xff] %v975
                %v977 = vld [vmem:[%s949 + $0x68] sm:$0xff]
                %978 = vst [vmem:[%s950 + $0x68] sm:$0xff] %v977
                %v979 = vld [vmem:[%s949 + $0x70] sm:$0xff]
                %980 = vst [vmem:[%s950 + $0x70] sm:$0xff] %v979
                %v981 = vld [vmem:[%s949 + $0x78] sm:$0xff]
                %982 = vst [vmem:[%s950 + $0x78] sm:$0xff] %v981
                %v983 = vld [vmem:[%s949 + $0x80] sm:$0xff]
                %984 = vst [vmem:[%s950 + $0x80] sm:$0xff] %v983
                %v985 = vld [vmem:[%s949 + $0x88] sm:$0xff]
                %986 = vst [vmem:[%s950 + $0x88] sm:$0xff] %v985
                %v987 = vld [vmem:[%s949 + $0x90] sm:$0xff]
                %988 = vst [vmem:[%s950 + $0x90] sm:$0xff] %v987
                %v989 = vld [vmem:[%s949 + $0x98] sm:$0xff]
                %990 = vst [vmem:[%s950 + $0x98] sm:$0xff] %v989
                %v991 = vld [vmem:[%s949 + $0xa0] sm:$0xff]
                %992 = vst [vmem:[%s950 + $0xa0] sm:$0xff] %v991
                %v993 = vld [vmem:[%s949 + $0xa8] sm:$0xff]
                %994 = vst [vmem:[%s950 + $0xa8] sm:$0xff] %v993
                %v995 = vld [vmem:[%s949 + $0xb0] sm:$0xff]
                %996 = vst [vmem:[%s950 + $0xb0] sm:$0xff] %v995
                %v997 = vld [vmem:[%s949 + $0xb8] sm:$0xff]
                %998 = vst [vmem:[%s950 + $0xb8] sm:$0xff] %v997
                %v999 = vld [vmem:[%s949 + $0xc0] sm:$0xff]
                %1000 = vst [vmem:[%s950 + $0xc0] sm:$0xff] %v999
                %v1001 = vld [vmem:[%s949 + $0xc8] sm:$0xff]
                %1002 = vst [vmem:[%s950 + $0xc8] sm:$0xff] %v1001
                %v1003 = vld [vmem:[%s949 + $0xd0] sm:$0xff]
                %1004 = vst [vmem:[%s950 + $0xd0] sm:$0xff] %v1003
                %v1005 = vld [vmem:[%s949 + $0xd8] sm:$0xff]
                %1006 = vst [vmem:[%s950 + $0xd8] sm:$0xff] %v1005
                %v1007 = vld [vmem:[%s949 + $0xe0] sm:$0xff]
                %1008 = vst [vmem:[%s950 + $0xe0] sm:$0xff] %v1007
                %v1009 = vld [vmem:[%s949 + $0xe8] sm:$0xff]
                %1010 = vst [vmem:[%s950 + $0xe8] sm:$0xff] %v1009
                %v1011 = vld [vmem:[%s949 + $0xf0] sm:$0xff]
                %1012 = vst [vmem:[%s950 + $0xf0] sm:$0xff] %v1011
                %v1013 = vld [vmem:[%s949 + $0xf8] sm:$0xff]
                %1014 = vst [vmem:[%s950 + $0xf8] sm:$0xff] %v1013
                %v1015 = vld [vmem:[%s949 + $0x100] sm:$0xff]
                %1016 = vst [vmem:[%s950 + $0x100] sm:$0xff] %v1015
                %v1017 = vld [vmem:[%s949 + $0x108] sm:$0xff]
                %1018 = vst [vmem:[%s950 + $0x108] sm:$0xff] %v1017
                %v1019 = vld [vmem:[%s949 + $0x110] sm:$0xff]
                %1020 = vst [vmem:[%s950 + $0x110] sm:$0xff] %v1019
                %v1021 = vld [vmem:[%s949 + $0x118] sm:$0xff]
                %1022 = vst [vmem:[%s950 + $0x118] sm:$0xff] %v1021
                %v1023 = vld [vmem:[%s949 + $0x120] sm:$0xff]
                %1024 = vst [vmem:[%s950 + $0x120] sm:$0xff] %v1023
                %v1025 = vld [vmem:[%s949 + $0x128] sm:$0xff]
                %1026 = vst [vmem:[%s950 + $0x128] sm:$0xff] %v1025
                %s1027 = sadd.s32 1, %s948
                %p1028 = scmp.ge.s32.totalorder %s1027, %s940
                %s1029 = scalar_select %p1028, 0, %s1027
                %s1030 = smul.u32 %s1029, 304
                %s1031 = smul.u32 %s1029, 304
                %s1032 = scalar_lea.vmem %s920, %s1030 [#allocation2]
                %s1033 = scalar_lea.vmem %s931, %s1031
              $region61: #{tpu_custom_call.1} parent=55 // loop_footer
                %s945 = sadd.s32 %s943, 1
              $region62: #{tpu_custom_call.1} parent=55 // loop_footer_branch
                %942 = sbr.rel target = $region58
              $region63: #{tpu_custom_call.1} parent=55 // loop_exit
                _
              %s1034 = sdiv.u32.pop %s927, 38
              %s1035 = srem.u32.pop %s927, 38
              %s1036 = smul.u32 %s1034, 38
              %s1037 = smul.u32 8, %s1036
              %s1038 = scalar_lea.vmem %s920, %s1037 [#allocation2]
              %s1039 = smul.u32 8, %s1036
              %s1040 = scalar_lea.vmem %s931, %s1039
              // While loop
              $region64: #{tpu_custom_call.1} parent=55 // loop_pre_header
                _
              $region65: #{tpu_custom_call.1} parent=55 // loop_header
                %s1042 = sphi 0, %s1044
                %p1043 = scmp.ge.s32.totalorder %s1042, %s1035
                %s1047 = sphi 0, %s1054
                %s1048 = sphi %s1038, %s1057
                %s1049 = sphi %s1040, %s1058
              $region66: #{tpu_custom_call.1} parent=55 // loop_header_branch
                %1046 = sbr.rel (%p1043) target = $region70
              $region67: #{tpu_custom_call.1} parent=55 // loop_body
                %v1050 = vld [vmem:[%s1048] sm:$0xff]
                %1051 = vst [vmem:[%s1049] sm:$0xff] %v1050
                %s1052 = sadd.s32 1, %s1047
                %p1053 = scmp.ge.s32.totalorder %s1052, %s1035
                %s1054 = scalar_select %p1053, 0, %s1052
                %s1055 = smul.u32 %s1054, 8
                %s1056 = smul.u32 %s1054, 8
                %s1057 = scalar_lea.vmem %s1038, %s1055 [#allocation2]
                %s1058 = scalar_lea.vmem %s1040, %s1056
              $region68: #{tpu_custom_call.1} parent=55 // loop_footer
                %s1044 = sadd.s32 %s1042, 1
              $region69: #{tpu_custom_call.1} parent=55 // loop_footer_branch
                %1041 = sbr.rel target = $region65
              $region70: #{tpu_custom_call.1} parent=55 // loop_exit
                _
            $region56: #{tpu_custom_call.1} parent=47 // pred_fallthru
              _
          $region48: #{tpu_custom_call.1} parent=43 // pred_fallthru
            _
          %1182 = vnop
        $region44: #{tpu_custom_call.1} parent=39 // pred_fallthru
          _
      $region40: #{tpu_custom_call.1} parent=5 // pred_fallthru
        _
      %p1183 = scmp.le.s32.totalorder 2, %s11
      // Predicated region
      $region93: #{tpu_custom_call.1} parent=5 // pred_check
        %p1184 = pneg %p1183
      $region94: #{tpu_custom_call.1} parent=5 // pred_check_branch
        %1186 = sbr.rel (%p1184) target = $region96
      $region95: #{tpu_custom_call.1} parent=5 // pred_region
        %s1187 = ssub.s32 %s11, 2
        // Predicated region
        $region97: #{tpu_custom_call.1} parent=95 // pred_check
          %p1188 = pneg %p150
        $region98: #{tpu_custom_call.1} parent=95 // pred_check_branch
          %1190 = sbr.rel (%p1188) target = $region100
        $region99: #{tpu_custom_call.1} parent=95 // pred_region
          %s1191 = sand.u32 %s135, 1
          %s1192 = sand.u32 %s135, 1
          %s1193 = smul.addr %s1192, 304
          %s1194 = scalar_lea.vmem [#allocation2], %s1193
        $region100: #{tpu_custom_call.1} parent=95 // pred_fallthru
          _
      $region96: #{tpu_custom_call.1} parent=5 // pred_fallthru
        _
    $region6: #{tpu_custom_call.1} parent=1 // loop_footer
      %s15 = sadd.s32 1, %s11
    $region7: #{tpu_custom_call.1} parent=1 // loop_footer_branch
      %10 = sbr.rel target = $region3
    $region8: #{tpu_custom_call.1} parent=1 // loop_exit
      _

</llo_original>
